<compile_context>
chip_gen: v6e
topology: v6e:2x2x1
jax: 0.10.0
libtpu: 0.0.40
codegen_flags: <defaults>
</compile_context>

<pallas_src>
import functools

import jax
import jax.numpy as jnp
from jax.experimental import pallas as pl
from jax.experimental.pallas import tpu as pltpu

BN_EPS = 1e-5


def _round_up(n, m):
    return ((n + m - 1) // m) * m


# ---------------------------------------------------------------------------
# Kernel
# ---------------------------------------------------------------------------
def _mlp_head_kernel(x_ref, w1_ref, w2_ref, pkd_ref, out_ref, *, b_true, h_p, p_p):
    # ---- Linear 1: [Bp, Cp] @ [Cp, Hp]  (bf16 in, f32 accumulate) ----
    # b1 omitted: training-mode BatchNorm subtracts the batch mean, which
    # cancels a constant per-feature bias exactly.
    h = jnp.dot(x_ref[...], w1_ref[...], preferred_element_type=jnp.float32)

    # ---- BatchNorm1d (training mode: batch stats, biased variance) ----
    # Padded batch rows of h are exactly zero (zero x rows, no bias), so plain
    # sums divided by the TRUE batch size give the exact statistics.
    inv_b = 1.0 / b_true
    mean = jnp.sum(h, axis=0, keepdims=True) * inv_b                  # [1, Hp]
    ex2 = jnp.sum(h * h, axis=0, keepdims=True) * inv_b               # [1, Hp]
    var = ex2 - mean * mean                                           # biased var
    inv_std = jax.lax.rsqrt(var + BN_EPS)                             # EUP

    gamma = pkd_ref[0:1, :h_p]                                        # [1, Hp]
    beta = pkd_ref[1:2, :h_p]                                         # [1, Hp]
    scale = gamma * inv_std
    shift = beta - mean * scale
    h = jnp.maximum(h * scale + shift, 0.0)                           # BN + ReLU

    # ---- Linear 2: [Bp, Hp] @ [Hp, Pp] + b2 ----
    y = jnp.dot(h.astype(jnp.bfloat16), w2_ref[...],
                preferred_element_type=jnp.float32)
    b2 = pkd_ref[2:3, :p_p]                                           # [1, Pp]
    out_ref[...] = (y + b2).astype(out_ref.dtype)


# ---------------------------------------------------------------------------
# One-time parameter preprocessing (hoisted out of the per-call path)
# ---------------------------------------------------------------------------
def prepare_params(w1, b1, gamma, beta, w2, b2):
    """Pad / transpose / cast the constant parameters once.

    Returns (w1_t, w2_t, packed, dims).  `b1` is intentionally unused: it
    cancels exactly under training-mode BatchNorm (it would have to be folded
    into beta for an eval-mode / running-stats variant).
    """
    del b1
    H, C = w1.shape
    P = w2.shape[0]
    Cp, Hp, Pp = _round_up(C, 128), _round_up(H, 128), _round_up(P, 128)
    Wmax = max(Hp, Pp)

    # Cast to bf16 BEFORE transpose/pad (half the bytes moved by the prep ops).
    w1_t = jnp.pad(jnp.transpose(w1.astype(jnp.bfloat16)),
                   ((0, Cp - C), (0, Hp - H)))                         # [Cp, Hp]
    w2_t = jnp.pad(jnp.transpose(w2.astype(jnp.bfloat16)),
                   ((0, Hp - H), (0, Pp - P)))                         # [Hp, Pp]

    # Single packed operand: row 0 = gamma, row 1 = beta, row 2 = b2.
    # NOTE: padded columns MUST stay exactly zero (keeps padded hidden lanes
    # at zero through BN; padded output lanes are sliced off).
    packed = jnp.zeros((3, Wmax), jnp.float32)
    packed = packed.at[0, :H].set(gamma.astype(jnp.float32))
    packed = packed.at[1, :H].set(beta.astype(jnp.float32))
    packed = packed.at[2, :P].set(b2.astype(jnp.float32))

    dims = (C, H, P, Cp, Hp, Pp, Wmax)
    return w1_t, w2_t, packed, dims


# ---------------------------------------------------------------------------
# Per-call path (jit: the x pad/cast fuses with the pallas_call)
# ---------------------------------------------------------------------------
@functools.partial(jax.jit, static_argnames=("dims",))
def mlp_head_apply(x, w1_t, w2_t, packed, dims):
    C, H, P, Cp, Hp, Pp, Wmax = dims
    B = x.shape[0]
    Bp = _round_up(B, 16)                       # bf16 sublane-pack granularity

    # x.squeeze() in the module just drops the trailing 1x1 spatial dims of a
    # pooled feature map; reshape is the B==1-safe equivalent.
    x2d = jnp.reshape(x, (B, C))
    x_p = jnp.pad(x2d.astype(jnp.bfloat16), ((0, Bp - B), (0, Cp - C)))

    kernel = functools.partial(_mlp_head_kernel,
                               b_true=float(B), h_p=Hp, p_p=Pp)
    vmem = pl.BlockSpec(memory_space=pltpu.MemorySpace.VMEM)
    out_p = pl.pallas_call(
        kernel,
        out_shape=jax.ShapeDtypeStruct((Bp, Pp), jnp.float32),
        in_specs=[vmem] * 4,
        out_specs=vmem,
    )(x_p, w1_t, w2_t, packed)

    return out_p[:B, :P]


def mlp_head(x, w1, b1, gamma, beta, w2, b2):
    """Convenience one-shot wrapper (prep + apply).  For repeated calls, run
    `prepare_params` once and call `mlp_head_apply` per step."""
    w1_t, w2_t, packed, dims = prepare_params(w1, b1, gamma, beta, w2, b2)
    return mlp_head_apply(x, w1_t, w2_t, packed, dims)


# ---------------------------------------------------------------------------
# Pure-f32 reference matching the PyTorch module in training mode
# ---------------------------------------------------------------------------
def reference(x, w1, b1, gamma, beta, w2, b2):
    B, C = x.shape[0], x.shape[1]
    x2d = jnp.reshape(x, (B, C)).astype(jnp.float32)
    h = x2d @ w1.T + b1
    mean = jnp.mean(h, axis=0, keepdims=True)
    var = jnp.mean((h - mean) ** 2, axis=0, keepdims=True)
    h = (h - mean) / jnp.sqrt(var + BN_EPS) * gamma + beta
    h = jnp.maximum(h, 0.0)
    return h @ w2.T + b2


if __name__ == "__main__":
    # MLPHead(in_channels=32, mlp_hidden_size=64, projection_size=16),
    # batch=8, pooled feature map [B, C, 1, 1].
    B, C, H, P = 8, 32, 64, 16

    key = jax.random.PRNGKey(0)
    kx, kw1, kb1, kw2, kb2 = jax.random.split(key, 5)

    x = jax.random.normal(kx, (B, C, 1, 1), dtype=jnp.float32)

    lim1 = 1.0 / jnp.sqrt(C)
    w1 = jax.random.uniform(kw1, (H, C), jnp.float32, -lim1, lim1)
    b1 = jax.random.uniform(kb1, (H,), jnp.float32, -lim1, lim1)
    gamma = jnp.ones((H,), jnp.float32)      # BatchNorm1d affine init
    beta = jnp.zeros((H,), jnp.float32)
    lim2 = 1.0 / jnp.sqrt(H)
    w2 = jax.random.uniform(kw2, (P, H), jnp.float32, -lim2, lim2)
    b2 = jax.random.uniform(kb2, (P,), jnp.float32, -lim2, lim2)

    # Hoisted one-time preprocessing; per-call path is a single jitted fn.
    w1_t, w2_t, packed, dims = prepare_params(w1, b1, gamma, beta, w2, b2)
    y = mlp_head_apply(x, w1_t, w2_t, packed, dims)
    jax.block_until_ready(y)

    y_ref = reference(x, w1, b1, gamma, beta, w2, b2)
    assert y.shape == (B, P)
    # Tolerance accounts for bf16 MXU inputs (f32 accumulation).
    assert jnp.allclose(y, y_ref, atol=2e-2, rtol=2e-2), "mismatch vs reference"

    # TODO(synk): eval-mode (running-stats) BatchNorm would require folding b1
    # into the shift and using the stored running mean/var; only the
    # training-mode forward is implemented here.

    print("KERNEL_OK")
</pallas_src>

<mosaic_0001>
module attributes {stable_mosaic.version = 11 : i64} {
  func.func @_mlp_head_kernel(%arg0: memref<16x128xbf16, #tpu.memory_space<vmem>>, %arg1: memref<128x128xbf16, #tpu.memory_space<vmem>>, %arg2: memref<128x128xbf16, #tpu.memory_space<vmem>>, %arg3: memref<3x128xf32, #tpu.memory_space<vmem>>, %arg4: memref<16x128xf32, #tpu.memory_space<vmem>>) attributes {dimension_semantics = [], scalar_prefetch = 0 : i64, scratch_operands = 0 : i64, tpu.core_type = #tpu.core_type<tc>} {
    %c0 = arith.constant 0 : index
    %c0_0 = arith.constant 0 : index
    %0 = vector.load %arg0[%c0, %c0_0] : memref<16x128xbf16, #tpu.memory_space<vmem>>, vector<16x128xbf16>
    %c0_1 = arith.constant 0 : index
    %c0_2 = arith.constant 0 : index
    %1 = vector.load %arg1[%c0_1, %c0_2] : memref<128x128xbf16, #tpu.memory_space<vmem>>, vector<128x128xbf16>
    %cst = arith.constant dense<0.000000e+00> : vector<16x128xf32>
    %2 = tpu.matmul %0, %1, %cst {dimension_numbers = #tpu.dot_dimension_numbers<[1], [0], [0], [1], [0, 0, 1, 1], [], []>} : vector<16x128xbf16>, vector<128x128xbf16>, vector<16x128xf32> -> vector<16x128xf32>
    %cst_3 = arith.constant dense<0.000000e+00> : vector<128xf32>
    %3 = vector.multi_reduction <add>, %2, %cst_3 [0] : vector<16x128xf32> to vector<128xf32>
    %4 = vector.shape_cast %3 : vector<128xf32> to vector<1x128xf32>
    %cst_4 = arith.constant 1.250000e-01 : f32
    %5 = vector.broadcast %cst_4 : f32 to vector<1x128xf32>
    %6 = arith.mulf %4, %5 : vector<1x128xf32>
    %7 = arith.mulf %2, %2 : vector<16x128xf32>
    %cst_5 = arith.constant dense<0.000000e+00> : vector<128xf32>
    %8 = vector.multi_reduction <add>, %7, %cst_5 [0] : vector<16x128xf32> to vector<128xf32>
    %9 = vector.shape_cast %8 : vector<128xf32> to vector<1x128xf32>
    %cst_6 = arith.constant 1.250000e-01 : f32
    %10 = vector.broadcast %cst_6 : f32 to vector<1x128xf32>
    %11 = arith.mulf %9, %10 : vector<1x128xf32>
    %12 = arith.mulf %6, %6 : vector<1x128xf32>
    %13 = arith.subf %11, %12 : vector<1x128xf32>
    %cst_7 = arith.constant 9.99999974E-6 : f32
    %14 = vector.broadcast %cst_7 : f32 to vector<1x128xf32>
    %15 = arith.addf %13, %14 : vector<1x128xf32>
    %16 = math.rsqrt %15 : vector<1x128xf32>
    %c0_8 = arith.constant 0 : index
    %c0_9 = arith.constant 0 : index
    %17 = vector.load %arg3[%c0_8, %c0_9] : memref<3x128xf32, #tpu.memory_space<vmem>>, vector<1x128xf32>
    %c1 = arith.constant 1 : index
    %c0_10 = arith.constant 0 : index
    %18 = vector.load %arg3[%c1, %c0_10] : memref<3x128xf32, #tpu.memory_space<vmem>>, vector<1x128xf32>
    %19 = arith.mulf %17, %16 : vector<1x128xf32>
    %20 = arith.mulf %6, %19 : vector<1x128xf32>
    %21 = arith.subf %18, %20 : vector<1x128xf32>
    %22 = vector.broadcast %19 : vector<1x128xf32> to vector<16x128xf32>
    %23 = arith.mulf %2, %22 : vector<16x128xf32>
    %24 = vector.broadcast %21 : vector<1x128xf32> to vector<16x128xf32>
    %25 = arith.addf %23, %24 : vector<16x128xf32>
    %cst_11 = arith.constant 0.000000e+00 : f32
    %26 = vector.broadcast %cst_11 : f32 to vector<16x128xf32>
    %27 = arith.maximumf %25, %26 : vector<16x128xf32>
    %28 = arith.truncf %27 : vector<16x128xf32> to vector<16x128xbf16>
    %c0_12 = arith.constant 0 : index
    %c0_13 = arith.constant 0 : index
    %29 = vector.load %arg2[%c0_12, %c0_13] : memref<128x128xbf16, #tpu.memory_space<vmem>>, vector<128x128xbf16>
    %cst_14 = arith.constant dense<0.000000e+00> : vector<16x128xf32>
    %30 = tpu.matmul %28, %29, %cst_14 {dimension_numbers = #tpu.dot_dimension_numbers<[1], [0], [0], [1], [0, 0, 1, 1], [], []>} : vector<16x128xbf16>, vector<128x128xbf16>, vector<16x128xf32> -> vector<16x128xf32>
    %c2 = arith.constant 2 : index
    %c0_15 = arith.constant 0 : index
    %31 = vector.load %arg3[%c2, %c0_15] : memref<3x128xf32, #tpu.memory_space<vmem>>, vector<1x128xf32>
    %32 = vector.broadcast %31 : vector<1x128xf32> to vector<16x128xf32>
    %33 = arith.addf %30, %32 : vector<16x128xf32>
    %c0_16 = arith.constant 0 : index
    %c0_17 = arith.constant 0 : index
    %34 = vector.load %arg4[%c0_16, %c0_17] : memref<16x128xf32, #tpu.memory_space<vmem>>, vector<16x128xf32>
    tpu.vector_store %arg4[%c0_16, %c0_17], %33 {strides = array<i32>} : memref<16x128xf32, #tpu.memory_space<vmem>>, vector<16x128xf32>,
    return
  }
}

</mosaic_0001>

<llo_original>
// kernel: mlp_head_apply.1
$region0: #{mlp_head_apply.1}
  #allocation0 [shape = 'u32[]', space=smem, size = 0x4, offset = 0x4, fixed_abs, tag = 'smem constant byte address 0x4 - core index']
  #allocation1 [shape = 'u32[144,128]{1,0:T(1,128)}', space=vmem, size = 0x12000, scoped, tag = 'internal scratch']
  %s0 = inlined_call_operand.vmem [shape: bf16[16,128], index: 0, kind: input, shape index: {}]
  %s1 = inlined_call_operand.hbm [shape: bf16[128,128], index: 1, kind: input, shape index: {}]
  %s2 = inlined_call_operand.hbm [shape: bf16[128,128], index: 2, kind: input, shape index: {}]
  %s3 = inlined_call_operand.vmem [shape: f32[3,128], index: 3, kind: input, shape index: {}]
  %s4 = inlined_call_operand.vmem [shape: f32[16,128], index: 4, kind: output, shape index: {}]
  %s5 = sld [smem:[#allocation0]]
  $region34: #{mlp_head_apply.1} parent=0
    _
  %s7 = ssub.s32 1, %s5
  %s8 = scalar_select 0, %s7, %s5
  $region1: #{mlp_head_apply.1} parent=0
    #allocation2 [shape = 'u8[32768]{0}', space=vmem, size = 0x8000, scoped, tag = 'input window, operand 1, single buffered']
    #allocation3 [shape = 's32[1]{0}', space=sflag, size = 0x4, scoped, tag = 'scoped memory for mlp_head_apply.1']
    #allocation4 [shape = 'u8[32768]{0}', space=vmem, size = 0x8000, scoped, tag = 'input window, operand 2, single buffered']
    #allocation5 [shape = 's32[1]{0}', space=sflag, size = 0x4, scoped, tag = 'scoped memory for mlp_head_apply.1']
    %9 = vsyncpa [#allocation3], 0
    %10 = vsyncpa [#allocation5], 0
    // Predicated region
    $region2: #{mlp_head_apply.1} parent=1 // pred_check
      _
    $region3: #{mlp_head_apply.1} parent=1 // pred_check_branch
      %12 = sbr.rel (0) target = $region5
    $region4: #{mlp_head_apply.1} parent=1 // pred_region
      _
    $region5: #{mlp_head_apply.1} parent=1 // pred_fallthru
      _
    // Predicated region
    $region6: #{mlp_head_apply.1} parent=1 // pred_check
      _
    $region7: #{mlp_head_apply.1} parent=1 // pred_check_branch
      %14 = sbr.rel (0) target = $region9
    $region8: #{mlp_head_apply.1} parent=1 // pred_region
      %s16 = ssub.s32 1024, 1024
      %17 = vsyncadd [#allocation3], %s16
      %s18 = sshll.u32 [#allocation2], 4
      %s19 = int_to_ptr.vmem [resolvable:$true] %s18
      %24 = dma.hbm_to_vmem [thread:$0]  %s1, 1024, %s19, [#allocation3], 64, 64, 4
    $region9: #{mlp_head_apply.1} parent=1 // pred_fallthru
      _
    // Predicated region
    $region10: #{mlp_head_apply.1} parent=1 // pred_check
      _
    $region11: #{mlp_head_apply.1} parent=1 // pred_check_branch
      %26 = sbr.rel (0) target = $region13
    $region12: #{mlp_head_apply.1} parent=1 // pred_region
      %s28 = ssub.s32 1024, 1024
      %29 = vsyncadd [#allocation5], %s28
      %s30 = sshll.u32 [#allocation4], 4
      %s31 = int_to_ptr.vmem [resolvable:$true] %s30
      %36 = dma.hbm_to_vmem [thread:$0]  %s2, 1024, %s31, [#allocation5], 64, 64, 4
    $region13: #{mlp_head_apply.1} parent=1 // pred_fallthru
      _
    // Predicated region
    $region14: #{mlp_head_apply.1} parent=1 // pred_check
      _
    $region15: #{mlp_head_apply.1} parent=1 // pred_check_branch
      %38 = sbr.rel (0) target = $region17
    $region16: #{mlp_head_apply.1} parent=1 // pred_region
      _
    $region17: #{mlp_head_apply.1} parent=1 // pred_fallthru
      _
    // Predicated region
    $region18: #{mlp_head_apply.1} parent=1 // pred_check
      _
    $region19: #{mlp_head_apply.1} parent=1 // pred_check_branch
      %40 = sbr.rel (0) target = $region21
    $region20: #{mlp_head_apply.1} parent=1 // pred_region
      %41 = dma.done [#allocation3], 1024
    $region21: #{mlp_head_apply.1} parent=1 // pred_fallthru
      _
    // Predicated region
    $region22: #{mlp_head_apply.1} parent=1 // pred_check
      _
    $region23: #{mlp_head_apply.1} parent=1 // pred_check_branch
      %43 = sbr.rel (0) target = $region25
    $region24: #{mlp_head_apply.1} parent=1 // pred_region
      %44 = dma.done [#allocation5], 1024
    $region25: #{mlp_head_apply.1} parent=1 // pred_fallthru
      _
    %v46 = vld [vmem:[%s0] sm:$0xf]
    %v47 = vld [vmem:[%s0 + $0x4] sm:$0xf]
    %v48 = vld [vmem:[#allocation2] sm:$0xf]
    %v49 = vld [vmem:[#allocation2 + $0x4] sm:$0xf]
    %v50 = vld [vmem:[#allocation2 + $0x8] sm:$0xf]
    %v51 = vld [vmem:[#allocation2 + $0xc] sm:$0xf]
    %v52 = vld [vmem:[#allocation2 + $0x10] sm:$0xf]
    %v53 = vld [vmem:[#allocation2 + $0x14] sm:$0xf]
    %v54 = vld [vmem:[#allocation2 + $0x18] sm:$0xf]
    %v55 = vld [vmem:[#allocation2 + $0x1c] sm:$0xf]
    %v56 = vld [vmem:[#allocation2 + $0x20] sm:$0xf]
    %v57 = vld [vmem:[#allocation2 + $0x24] sm:$0xf]
    %v58 = vld [vmem:[#allocation2 + $0x28] sm:$0xf]
    %v59 = vld [vmem:[#allocation2 + $0x2c] sm:$0xf]
    %v60 = vld [vmem:[#allocation2 + $0x30] sm:$0xf]
    %v61 = vld [vmem:[#allocation2 + $0x34] sm:$0xf]
    %v62 = vld [vmem:[#allocation2 + $0x38] sm:$0xf]
    %v63 = vld [vmem:[#allocation2 + $0x3c] sm:$0xf]
    %v66 = vunpack.c.l.b16 %v46
    %v67 = vunpack.c.l.b16 %v47
    %v68 = vpack.c.b16 %v67, %v66
    %v86 = vunpack.c.l.b16 %v48
    %v87 = vunpack.c.l.b16 %v49
    %v88 = vunpack.c.l.b16 %v50
    %v89 = vunpack.c.l.b16 %v51
    %v90 = vunpack.c.l.b16 %v52
    %v91 = vunpack.c.l.b16 %v53
    %v92 = vunpack.c.l.b16 %v54
    %v93 = vunpack.c.l.b16 %v55
    %v94 = vunpack.c.l.b16 %v56
    %v95 = vunpack.c.l.b16 %v57
    %v96 = vunpack.c.l.b16 %v58
    %v97 = vunpack.c.l.b16 %v59
    %v98 = vunpack.c.l.b16 %v60
    %v99 = vunpack.c.l.b16 %v61
    %v100 = vunpack.c.l.b16 %v62
    %v101 = vunpack.c.l.b16 %v63
    %v102 = vpack.c.b16 %v87, %v86
    %v103 = vpack.c.b16 %v89, %v88
    %v104 = vpack.c.b16 %v91, %v90
    %v105 = vpack.c.b16 %v93, %v92
    %v106 = vpack.c.b16 %v95, %v94
    %v107 = vpack.c.b16 %v97, %v96
    %v108 = vpack.c.b16 %v99, %v98
    %v109 = vpack.c.b16 %v101, %v100
    %118 = vmatprep.subr.bf16.mxu0 0
    %119 = vmatpush1.bf16.msra.mxu0 %v109
    %120 = vmatprep.subr.bf16.mxu0 0
    %121 = vmatpush1.bf16.msra.mxu0 %v108
    %122 = vmatprep.subr.bf16.mxu0 0
    %123 = vmatpush1.bf16.msra.mxu0 %v107
    %124 = vmatprep.subr.bf16.mxu0 0
    %125 = vmatpush1.bf16.msra.mxu0 %v106
    %126 = vmatprep.subr.bf16.mxu0 0
    %127 = vmatpush1.bf16.msra.mxu0 %v105
    %128 = vmatprep.subr.bf16.mxu0 0
    %129 = vmatpush1.bf16.msra.mxu0 %v104
    %130 = vmatprep.subr.bf16.mxu0 0
    %131 = vmatpush1.bf16.msra.mxu0 %v103
    %132 = vmatprep.subr.bf16.mxu0 0
    %133 = vmatpush1.bf16.msra.mxu0 %v102
    %134 = vmatprep.subr.bf16.mxu0 0
    %135 = vmatpush2.bf16.msra.mxu0 0
    %136 = vmatprep.subr.bf16.mxu0 0
    %137 = vmatpush2.bf16.msra.mxu0 0
    %138 = vmatprep.subr.bf16.mxu0 0
    %139 = vmatpush2.bf16.msra.mxu0 0
    %140 = vmatprep.subr.bf16.mxu0 0
    %141 = vmatpush2.bf16.msra.mxu0 0
    %142 = vmatprep.subr.bf16.mxu0 0
    %143 = vmatpush2.bf16.msra.mxu0 0
    %144 = vmatprep.subr.bf16.mxu0 0
    %145 = vmatpush2.bf16.msra.mxu0 0
    %146 = vmatprep.subr.bf16.mxu0 0
    %147 = vmatpush2.bf16.msra.mxu0 0
    %148 = vmatprep.subr.bf16.mxu0 0
    %149 = vmatpush2.bf16.msra.mxu0 0
    %150 = vmatprep.mubr.bf16.mxu0 0
    %151 = vmatmul.mubr.bf16.gmra.mxu0 %v68
    %v152 = vpop.f32.mrf.mxu0
    %v153 = vadd.f32 0.0, %v152
    %v154 = vpop.f32.mrf.mxu0
    %v155 = vpop.f32.mrf.mxu0
    %v156 = vadd.f32 0.0, %v155
    %v157 = vpop.f32.mrf.mxu0
    %158 = vdwg.mxu0
    %v159 = vadd.f32 %v153, %v156
    %v160 = vrot.slane %v159, 4
    %v161 = vadd.f32 %v159, %v160
    %v162 = vrot.slane %v161, 2
    %v163 = vadd.f32 %v161, %v162
    %v164 = vrot.slane %v163, 1
    %v165 = vadd.f32 %v163, %v164
    %v166 = vmul.f32 %v165, 0.125
    %v167 = vmul.f32 %v153, %v153
    %v168 = vmul.f32 %v156, %v156
    %v169 = vadd.f32 %v167, %v168
    %v170 = vrot.slane %v169, 4
    %v171 = vadd.f32 %v169, %v170
    %v172 = vrot.slane %v171, 2
    %v173 = vadd.f32 %v171, %v172
    %v174 = vrot.slane %v173, 1
    %v175 = vadd.f32 %v173, %v174
    %v176 = vmul.f32 %v175, 0.125
    %v177 = vmul.f32 %v166, %v166
    %v178 = vsub.f32 %v176, %v177
    %v179 = vadd.f32 %v178, 1e-05
    %v180 = vrsqrt.pop %v179
    %v181 = vld [vmem:[%s3] sm:$0x1]
    %v182 = vld [vmem:[%s3 + $0x1] sm:$0x1]
    %v183 = vmul.f32 %v181, %v180
    %v184 = vmul.f32 %v166, %v183
    %v185 = vsub.f32 %v182, %v184
    %v186 = vlaneseq
    %v187 = vshrl.u32 %v186, 7
    %v188 = vsub.s32 0, %v187
    %v189 = vrot.slane %v183, %v188
    %v190 = vmul.f32 %v153, %v189
    %v191 = vmul.f32 %v156, %v189
    %v192 = vlaneseq
    %v193 = vshrl.u32 %v192, 7
    %v194 = vsub.s32 0, %v193
    %v195 = vrot.slane %v185, %v194
    %v196 = vadd.f32 %v190, %v195
    %v197 = vadd.f32 %v191, %v195
    %v198 = vmax.f32 %v196, 0.0
    %v199 = vmax.f32 %v197, 0.0
    %v200 = vpack.c.bf16 %v199, %v198
    %v201 = vld [vmem:[#allocation4] sm:$0xf]
    %v202 = vld [vmem:[#allocation4 + $0x4] sm:$0xf]
    %v203 = vld [vmem:[#allocation4 + $0x8] sm:$0xf]
    %v204 = vld [vmem:[#allocation4 + $0xc] sm:$0xf]
    %v205 = vld [vmem:[#allocation4 + $0x10] sm:$0xf]
    %v206 = vld [vmem:[#allocation4 + $0x14] sm:$0xf]
    %v207 = vld [vmem:[#allocation4 + $0x18] sm:$0xf]
    %v208 = vld [vmem:[#allocation4 + $0x1c] sm:$0xf]
    %v209 = vld [vmem:[#allocation4 + $0x20] sm:$0xf]
    %v210 = vld [vmem:[#allocation4 + $0x24] sm:$0xf]
    %v211 = vld [vmem:[#allocation4 + $0x28] sm:$0xf]
    %v212 = vld [vmem:[#allocation4 + $0x2c] sm:$0xf]
    %v213 = vld [vmem:[#allocation4 + $0x30] sm:$0xf]
    %v214 = vld [vmem:[#allocation4 + $0x34] sm:$0xf]
    %v215 = vld [vmem:[#allocation4 + $0x38] sm:$0xf]
    %v216 = vld [vmem:[#allocation4 + $0x3c] sm:$0xf]
    %v217 = vld [vmem:[%s3 + $0x2] sm:$0x1]
    %v218 = vlaneseq
    %v219 = vshrl.u32 %v218, 7
    %v220 = vsub.s32 0, %v219
    %v221 = vrot.slane %v217, %v220
    %v238 = vunpack.c.l.b16 %v201
    %v239 = vunpack.c.l.b16 %v202
    %v240 = vunpack.c.l.b16 %v203
    %v241 = vunpack.c.l.b16 %v204
    %v242 = vunpack.c.l.b16 %v205
    %v243 = vunpack.c.l.b16 %v206
    %v244 = vunpack.c.l.b16 %v207
    %v245 = vunpack.c.l.b16 %v208
    %v246 = vunpack.c.l.b16 %v209
    %v247 = vunpack.c.l.b16 %v210
    %v248 = vunpack.c.l.b16 %v211
    %v249 = vunpack.c.l.b16 %v212
    %v250 = vunpack.c.l.b16 %v213
    %v251 = vunpack.c.l.b16 %v214
    %v252 = vunpack.c.l.b16 %v215
    %v253 = vunpack.c.l.b16 %v216
    %v254 = vpack.c.b16 %v239, %v238
    %v255 = vpack.c.b16 %v241, %v240
    %v256 = vpack.c.b16 %v243, %v242
    %v257 = vpack.c.b16 %v245, %v244
    %v258 = vpack.c.b16 %v247, %v246
    %v259 = vpack.c.b16 %v249, %v248
    %v260 = vpack.c.b16 %v251, %v250
    %v261 = vpack.c.b16 %v253, %v252
    %270 = vmatprep.subr.bf16.mxu0 0
    %271 = vmatpush1.bf16.msra.mxu0 %v261
    %272 = vmatprep.subr.bf16.mxu0 0
    %273 = vmatpush1.bf16.msra.mxu0 %v260
    %274 = vmatprep.subr.bf16.mxu0 0
    %275 = vmatpush1.bf16.msra.mxu0 %v259
    %276 = vmatprep.subr.bf16.mxu0 0
    %277 = vmatpush1.bf16.msra.mxu0 %v258
    %278 = vmatprep.subr.bf16.mxu0 0
    %279 = vmatpush1.bf16.msra.mxu0 %v257
    %280 = vmatprep.subr.bf16.mxu0 0
    %281 = vmatpush1.bf16.msra.mxu0 %v256
    %282 = vmatprep.subr.bf16.mxu0 0
    %283 = vmatpush1.bf16.msra.mxu0 %v255
    %284 = vmatprep.subr.bf16.mxu0 0
    %285 = vmatpush1.bf16.msra.mxu0 %v254
    %286 = vmatprep.subr.bf16.mxu0 0
    %287 = vmatpush2.bf16.msra.mxu0 0
    %288 = vmatprep.subr.bf16.mxu0 0
    %289 = vmatpush2.bf16.msra.mxu0 0
    %290 = vmatprep.subr.bf16.mxu0 0
    %291 = vmatpush2.bf16.msra.mxu0 0
    %292 = vmatprep.subr.bf16.mxu0 0
    %293 = vmatpush2.bf16.msra.mxu0 0
    %294 = vmatprep.subr.bf16.mxu0 0
    %295 = vmatpush2.bf16.msra.mxu0 0
    %296 = vmatprep.subr.bf16.mxu0 0
    %297 = vmatpush2.bf16.msra.mxu0 0
    %298 = vmatprep.subr.bf16.mxu0 0
    %299 = vmatpush2.bf16.msra.mxu0 0
    %300 = vmatprep.subr.bf16.mxu0 0
    %301 = vmatpush2.bf16.msra.mxu0 0
    %302 = vmatprep.mubr.bf16.mxu0 0
    %303 = vmatmul.mubr.bf16.gmra.mxu0 %v200
    %v304 = vpop.f32.mrf.mxu0
    %v305 = vadd.f32 %v221, %v304
    %v306 = vpop.f32.mrf.mxu0
    %v307 = vpop.f32.mrf.mxu0
    %v308 = vadd.f32 %v221, %v307
    %v309 = vpop.f32.mrf.mxu0
    %310 = vdwg.mxu0
    %311 = vst [vmem:[%s4] sm:$0xff] %v305
    %312 = vst [vmem:[%s4 + $0x8] sm:$0xff] %v308
    // Predicated region
    $region26: #{mlp_head_apply.1} parent=1 // pred_check
      _
    $region27: #{mlp_head_apply.1} parent=1 // pred_check_branch
      %314 = sbr.rel (0) target = $region29
    $region28: #{mlp_head_apply.1} parent=1 // pred_region
      _
    $region29: #{mlp_head_apply.1} parent=1 // pred_fallthru
      _
    // Predicated region
    $region30: #{mlp_head_apply.1} parent=1 // pred_check
      _
    $region31: #{mlp_head_apply.1} parent=1 // pred_check_branch
      %316 = sbr.rel (0) target = $region33
    $region32: #{mlp_head_apply.1} parent=1 // pred_region
      _
    $region33: #{mlp_head_apply.1} parent=1 // pred_fallthru
      _
    %317 = vsyncpa [#allocation3], 1
    %318 = vsyncpa [#allocation5], 1

</llo_original>
